<compile_context>
chip_gen: v7x
topology: tpu7x:2x2x1
jax: 0.10.0
libtpu: 0.0.40
codegen_flags: <defaults>
</compile_context>

<pallas_src>
import functools

import jax
import jax.numpy as jnp
from jax.experimental import pallas as pl
from jax.experimental.pallas import tpu as pltpu


def _round_up(a, b):
    return (a + b - 1) // b * b


def _has_pipeline_mode():
    """One-time capability check for BlockSpec(pipeline_mode=pl.Buffered(1))."""
    if not hasattr(pl, "Buffered"):
        return False
    try:
        pl.BlockSpec((8, 128), lambda i: (0, 0), pipeline_mode=pl.Buffered(1))
        return True
    except TypeError:
        return False


_HAS_PIPELINE_MODE = _has_pipeline_mode()


def _vmem_capacity_bytes():
    try:
        return int(pltpu.get_tpu_info().vmem_capacity_bytes)
    except Exception:
        return 128 << 20  # conservative v5e/v6e default


# ---------------------------------------------------------------------------
# Kernels
# ---------------------------------------------------------------------------

def _fused_kernel(x_ref, w1_ref, sh1_ref, w2_ref, sh2_ref, w3_ref, b3_ref,
                  o_ref):
    # Layer 1: linear (BN scale pre-folded into weights) -> +shift -> ReLU.
    # x is kept f32 in HBM; cast to the weight dtype in-kernel (VPU filler).
    x = x_ref[...].astype(w1_ref.dtype)
    h1 = jnp.dot(x, w1_ref[...], preferred_element_type=jnp.float32)
    h1 = jnp.maximum(h1 + sh1_ref[...], 0.0)
    # (dropout == identity in eval mode)
    # Layer 2: linear (BN scale pre-folded) -> +shift -> ReLU
    h2 = jnp.dot(h1.astype(w2_ref.dtype), w2_ref[...],
                 preferred_element_type=jnp.float32)
    h2 = jnp.maximum(h2 + sh2_ref[...], 0.0)
    # Layer 3: linear with bias (output lane-padded to a multiple of 128)
    out = jnp.dot(h2.astype(w3_ref.dtype), w3_ref[...],
                  preferred_element_type=jnp.float32)
    o_ref[...] = (out + b3_ref[...]).astype(o_ref.dtype)


def _ksplit_kernel(x_ref, w1_ref, sh1_ref, w2_ref, sh2_ref, w3_ref, b3_ref,
                   o_ref, acc_ref):
    # Innermost grid axis k splits input_dim; acc_ref is the f32 (tb, H1)
    # accumulator for layer 1.  Layers 2-3 run once, on the last k step.
    k = pl.program_id(1)

    @pl.when(k == 0)
    def _():
        acc_ref[...] = jnp.zeros_like(acc_ref)

    acc_ref[...] += jnp.dot(x_ref[...].astype(w1_ref.dtype), w1_ref[...],
                            preferred_element_type=jnp.float32)

    @pl.when(k == pl.num_programs(1) - 1)
    def _():
        h1 = jnp.maximum(acc_ref[...] + sh1_ref[...], 0.0)
        h2 = jnp.dot(h1.astype(w2_ref.dtype), w2_ref[...],
                     preferred_element_type=jnp.float32)
        h2 = jnp.maximum(h2 + sh2_ref[...], 0.0)
        out = jnp.dot(h2.astype(w3_ref.dtype), w3_ref[...],
                      preferred_element_type=jnp.float32)
        o_ref[...] = (out + b3_ref[...]).astype(o_ref.dtype)


# ---------------------------------------------------------------------------
# Parameter prep (one-time): fold eval-mode BN into the linear weights.
# ---------------------------------------------------------------------------

def prepare_params(params, *, use_bf16=True, eps=1e-5, lane_pad=128):
    """Fold BN into the (transposed) weights, lane-pad the classifier, and
    cast matmul operands to bf16 (shift/bias stay f32)."""
    w1, (g1, be1, m1, v1), w2, (g2, be2, m2, v2), w3, b3 = params

    s1 = g1 / jnp.sqrt(v1 + eps)
    sh1 = (be1 - m1 * s1).reshape(1, -1).astype(jnp.float32)
    s2 = g2 / jnp.sqrt(v2 + eps)
    sh2 = (be2 - m2 * s2).reshape(1, -1).astype(jnp.float32)

    w1f = w1.T * s1          # (input_dim, 512), BN scale folded into columns
    w2f = w2.T * s2          # (512, 256)

    num_classes = w3.shape[0]
    n_pad = max(lane_pad, _round_up(num_classes, lane_pad))
    w3t = w3.T               # (256, num_classes)
    w3p = jnp.zeros((w3t.shape[0], n_pad), jnp.float32).at[:, :num_classes].set(w3t)
    b3p = jnp.zeros((1, n_pad), jnp.float32).at[0, :num_classes].set(b3)

    wdt = jnp.bfloat16 if use_bf16 else jnp.float32
    return dict(
        w1=w1f.astype(wdt), sh1=sh1,
        w2=w2f.astype(wdt), sh2=sh2,
        w3=w3p.astype(wdt), b3=b3p,
        num_classes=num_classes)


# ---------------------------------------------------------------------------
# Forward
# ---------------------------------------------------------------------------

@functools.partial(
    jax.jit,
    static_argnames=("num_classes", "tile_b", "k_tile", "force_k_split"))
def _forward_impl(x, w1, sh1, w2, sh2, w3, b3, *, num_classes, tile_b,
                  k_tile, force_k_split):
    B, input_dim = x.shape
    H1, H2 = w1.shape[1], w2.shape[1]
    Np = w3.shape[1]
    wbytes = w1.dtype.itemsize
    xbytes = x.dtype.itemsize

    # ---- batch tile: no batch padding; cdiv grid masks the ragged tile ----
    tb = max(8, _round_up(min(tile_b, _round_up(B, 8)), 8))
    # Split into two "parallel" grid steps only when each core still gets a
    # >=128-row tile (only pays on v7x's 2 TensorCores).
    if pl.cdiv(B, tb) < 2 and B >= 256:
        tb = max(128, _round_up(pl.cdiv(B, 2), 8))
    nb = pl.cdiv(B, tb)

    # ---- generation-aware VMEM budget ----
    vmem_cap = _vmem_capacity_bytes()
    vmem_max = vmem_cap - max(vmem_cap // 8, 8 << 20)   # ~56 MiB v7x, ~112 MiB v5e/v6e

    fixed_bytes = (H1 * H2 + H2 * Np) * wbytes + (H1 + H2 + Np) * 4
    stream_bytes = 2 * tb * (input_dim * xbytes + Np * 4)
    temp_bytes = 2 * tb * (H1 + H2) * 4
    no_split_est = input_dim * H1 * wbytes + fixed_bytes + stream_bytes + temp_bytes

    use_ksplit = force_k_split or (no_split_est > (vmem_max * 3) // 4)

    cost = pl.CostEstimate(
        flops=2 * B * (input_dim * H1 + H1 * H2 + H2 * Np),
        transcendentals=0,
        bytes_accessed=(B * input_dim * xbytes
                        + (input_dim * H1 + H1 * H2 + H2 * Np) * wbytes
                        + (H1 + H2 + Np) * 4 + B * Np * 4))

    def resident(shape):
        # Constant-index blocks: single-buffered when supported.
        if _HAS_PIPELINE_MODE:
            return pl.BlockSpec(shape, lambda *_: (0,) * len(shape),
                                pipeline_mode=pl.Buffered(1))
        return pl.BlockSpec(shape, lambda *_: (0,) * len(shape))

    if not use_ksplit:
        vmem_limit = int(min(max(2 * no_split_est, 32 << 20), vmem_max))
        out = pl.pallas_call(
            _fused_kernel,
            out_shape=jax.ShapeDtypeStruct((B, Np), jnp.float32),
            grid_spec=pltpu.PrefetchScalarGridSpec(
                num_scalar_prefetch=0,
                grid=(nb,),
                in_specs=[
                    pl.BlockSpec((tb, input_dim), lambda i: (i, 0)),  # x tile (f32)
                    resident((input_dim, H1)),                        # w1 (BN-folded)
                    resident((1, H1)),                                # bn1 shift
                    resident((H1, H2)),                               # w2 (BN-folded)
                    resident((1, H2)),                                # bn2 shift
                    resident((H2, Np)),                               # w3 (lane-padded)
                    resident((1, Np)),                                # b3 (lane-padded)
                ],
                out_specs=pl.BlockSpec((tb, Np), lambda i: (i, 0)),
            ),
            compiler_params=pltpu.CompilerParams(
                dimension_semantics=("parallel",),
                vmem_limit_bytes=vmem_limit),
            cost_estimate=cost,
        )(x, w1, sh1, w2, sh2, w3, b3)
        return out[:, :num_classes]

    # ---- K-split path: stream W1 / x over input_dim (v7x 64 MiB VMEM) ----
    tk = _round_up(min(k_tile, _round_up(input_dim, 128)), 128)
    Kp = _round_up(input_dim, tk)
    nk = Kp // tk
    if Kp != input_dim:
        # Zero padding => padded K columns/rows contribute exactly 0.
        x = jnp.pad(x, ((0, 0), (0, Kp - input_dim)))
        w1 = jnp.pad(w1, ((0, Kp - input_dim), (0, 0)))

    ksplit_est = (2 * tk * H1 * wbytes + fixed_bytes
                  + 2 * tb * (tk * xbytes + Np * 4)
                  + tb * H1 * 4 + 2 * tb * (H1 + H2) * 4)
    vmem_limit = int(min(max(2 * ksplit_est, 32 << 20), vmem_max))

    out = pl.pallas_call(
        _ksplit_kernel,
        out_shape=jax.ShapeDtypeStruct((B, Np), jnp.float32),
        grid_spec=pltpu.PrefetchScalarGridSpec(
            num_scalar_prefetch=0,
            grid=(nb, nk),
            in_specs=[
                pl.BlockSpec((tb, tk), lambda i, k: (i, k)),   # x tile (f32)
                pl.BlockSpec((tk, H1), lambda i, k: (k, 0)),   # w1 K-slab
                resident((1, H1)),                              # bn1 shift
                resident((H1, H2)),                             # w2
                resident((1, H2)),                              # bn2 shift
                resident((H2, Np)),                             # w3
                resident((1, Np)),                              # b3
            ],
            out_specs=pl.BlockSpec((tb, Np), lambda i, k: (i, 0)),
            scratch_shapes=[pltpu.VMEM((tb, H1), jnp.float32)],
        ),
        compiler_params=pltpu.CompilerParams(
            dimension_semantics=("parallel", "arbitrary"),
            vmem_limit_bytes=vmem_limit),
        cost_estimate=cost,
    )(x, w1, sh1, w2, sh2, w3, b3)
    return out[:, :num_classes]


def nonlinear_classifier_forward(x, prep, *, tile_b=256, k_tile=512,
                                 force_k_split=False):
    """x: [B, input_dim] float32.  Returns [B, num_classes] float32."""
    return _forward_impl(
        x, prep["w1"], prep["sh1"], prep["w2"], prep["sh2"],
        prep["w3"], prep["b3"],
        num_classes=prep["num_classes"], tile_b=tile_b,
        k_tile=k_tile, force_k_split=force_k_split)


# ---------------------------------------------------------------------------
# Init / reference (for the self-test)
# ---------------------------------------------------------------------------

def _xavier_uniform(key, out_dim, in_dim):
    bound = (6.0 / (in_dim + out_dim)) ** 0.5
    return jax.random.uniform(key, (out_dim, in_dim), jnp.float32,
                              minval=-bound, maxval=bound)


def init_params(key, input_dim, num_classes):
    k1, k2, k3 = jax.random.split(key, 3)
    w1 = _xavier_uniform(k1, 512, input_dim)
    w2 = _xavier_uniform(k2, 256, 512)
    w3 = _xavier_uniform(k3, num_classes, 256)
    b3 = jnp.zeros((num_classes,), jnp.float32)
    # BatchNorm1d defaults: gamma=1, beta=0, running_mean=0, running_var=1
    bn1 = (jnp.ones((512,), jnp.float32), jnp.zeros((512,), jnp.float32),
           jnp.zeros((512,), jnp.float32), jnp.ones((512,), jnp.float32))
    bn2 = (jnp.ones((256,), jnp.float32), jnp.zeros((256,), jnp.float32),
           jnp.zeros((256,), jnp.float32), jnp.ones((256,), jnp.float32))
    return (w1, bn1, w2, bn2, w3, b3)


def _reference_forward(x, params):
    w1, (g1, be1, m1, v1), w2, (g2, be2, m2, v2), w3, b3 = params
    eps = 1e-5
    h = x @ w1.T
    h = (h - m1) / jnp.sqrt(v1 + eps) * g1 + be1
    h = jnp.maximum(h, 0.0)
    h = h @ w2.T
    h = (h - m2) / jnp.sqrt(v2 + eps) * g2 + be2
    h = jnp.maximum(h, 0.0)
    return h @ w3.T + b3


if __name__ == "__main__":
    key = jax.random.PRNGKey(0)
    kx1, kp1, kx2, kp2 = jax.random.split(key, 4)

    # --- 1) default fused path (bf16 weights, f32 accumulation) ---
    batch, input_dim, num_classes = 16, 128, 10
    x = jax.random.normal(kx1, (batch, input_dim), jnp.float32)
    params = init_params(kp1, input_dim, num_classes)
    prep = prepare_params(params)               # BN fold + lane pad + bf16 cast
    out = jax.block_until_ready(nonlinear_classifier_forward(x, prep))
    ref = _reference_forward(x, params)
    assert out.shape == (batch, num_classes)
    assert jnp.allclose(out, ref, atol=5e-2, rtol=5e-2), float(
        jnp.max(jnp.abs(out - ref)))

    # --- 2) K-split path (forced, f32 weights, ragged input_dim 320->384) ---
    batch2, input_dim2 = 24, 320
    x2 = jax.random.normal(kx2, (batch2, input_dim2), jnp.float32)
    params2 = init_params(kp2, input_dim2, num_classes)
    prep2 = prepare_params(params2, use_bf16=False)
    out2 = jax.block_until_ready(
        nonlinear_classifier_forward(x2, prep2, k_tile=128, force_k_split=True))
    ref2 = _reference_forward(x2, params2)
    assert out2.shape == (batch2, num_classes)
    assert jnp.allclose(out2, ref2, atol=2e-3, rtol=2e-3), float(
        jnp.max(jnp.abs(out2 - ref2)))

    print("KERNEL_OK")
</pallas_src>

<mosaic_0001>
module attributes {stable_mosaic.version = 11 : i64} {
  func.func @_fused_kernel(%arg0: i32, %arg1: memref<16x128xf32, #tpu.memory_space<vmem>>, %arg2: memref<128x512xbf16, #tpu.memory_space<vmem>>, %arg3: memref<1x512xf32, #tpu.memory_space<vmem>>, %arg4: memref<512x256xbf16, #tpu.memory_space<vmem>>, %arg5: memref<1x256xf32, #tpu.memory_space<vmem>>, %arg6: memref<256x128xbf16, #tpu.memory_space<vmem>>, %arg7: memref<1x128xf32, #tpu.memory_space<vmem>>, %arg8: memref<16x128xf32, #tpu.memory_space<vmem>>) attributes {dimension_semantics = [#tpu.dimension_semantics<parallel>], iteration_bounds = array<i64: 1>, scalar_prefetch = 0 : i64, scratch_operands = 0 : i64, tpu.core_type = #tpu.core_type<tc>, window_params = [{transform_indices = @transform_0, window_bounds = array<i64: 16, 128>}, {pipeline_mode = #tpu.pipeline_mode<synchronous>, transform_indices = @transform_1, window_bounds = array<i64: 128, 512>}, {pipeline_mode = #tpu.pipeline_mode<synchronous>, transform_indices = @transform_2, window_bounds = array<i64: 1, 512>}, {pipeline_mode = #tpu.pipeline_mode<synchronous>, transform_indices = @transform_3, window_bounds = array<i64: 512, 256>}, {pipeline_mode = #tpu.pipeline_mode<synchronous>, transform_indices = @transform_4, window_bounds = array<i64: 1, 256>}, {pipeline_mode = #tpu.pipeline_mode<synchronous>, transform_indices = @transform_5, window_bounds = array<i64: 256, 128>}, {pipeline_mode = #tpu.pipeline_mode<synchronous>, transform_indices = @transform_6, window_bounds = array<i64: 1, 128>}, {transform_indices = @transform_7, window_bounds = array<i64: 16, 128>}]} {
    %c0 = arith.constant 0 : index
    %c0_0 = arith.constant 0 : index
    %0 = vector.load %arg1[%c0, %c0_0] : memref<16x128xf32, #tpu.memory_space<vmem>>, vector<16x128xf32>
    %1 = arith.truncf %0 : vector<16x128xf32> to vector<16x128xbf16>
    %c0_1 = arith.constant 0 : index
    %c0_2 = arith.constant 0 : index
    %2 = vector.load %arg2[%c0_1, %c0_2] : memref<128x512xbf16, #tpu.memory_space<vmem>>, vector<128x512xbf16>
    %cst = arith.constant dense<0.000000e+00> : vector<16x512xf32>
    %3 = tpu.matmul %1, %2, %cst {dimension_numbers = #tpu.dot_dimension_numbers<[1], [0], [0], [1], [0, 0, 1, 1], [], []>} : vector<16x128xbf16>, vector<128x512xbf16>, vector<16x512xf32> -> vector<16x512xf32>
    %c0_3 = arith.constant 0 : index
    %c0_4 = arith.constant 0 : index
    %4 = vector.load %arg3[%c0_3, %c0_4] : memref<1x512xf32, #tpu.memory_space<vmem>>, vector<1x512xf32>
    %5 = vector.broadcast %4 : vector<1x512xf32> to vector<16x512xf32>
    %6 = arith.addf %3, %5 : vector<16x512xf32>
    %cst_5 = arith.constant 0.000000e+00 : f32
    %7 = vector.broadcast %cst_5 : f32 to vector<16x512xf32>
    %8 = arith.maximumf %6, %7 : vector<16x512xf32>
    %9 = arith.truncf %8 : vector<16x512xf32> to vector<16x512xbf16>
    %c0_6 = arith.constant 0 : index
    %c0_7 = arith.constant 0 : index
    %10 = vector.load %arg4[%c0_6, %c0_7] : memref<512x256xbf16, #tpu.memory_space<vmem>>, vector<512x256xbf16>
    %cst_8 = arith.constant dense<0.000000e+00> : vector<16x256xf32>
    %11 = tpu.matmul %9, %10, %cst_8 {dimension_numbers = #tpu.dot_dimension_numbers<[1], [0], [0], [1], [0, 0, 1, 1], [], []>} : vector<16x512xbf16>, vector<512x256xbf16>, vector<16x256xf32> -> vector<16x256xf32>
    %c0_9 = arith.constant 0 : index
    %c0_10 = arith.constant 0 : index
    %12 = vector.load %arg5[%c0_9, %c0_10] : memref<1x256xf32, #tpu.memory_space<vmem>>, vector<1x256xf32>
    %13 = vector.broadcast %12 : vector<1x256xf32> to vector<16x256xf32>
    %14 = arith.addf %11, %13 : vector<16x256xf32>
    %cst_11 = arith.constant 0.000000e+00 : f32
    %15 = vector.broadcast %cst_11 : f32 to vector<16x256xf32>
    %16 = arith.maximumf %14, %15 : vector<16x256xf32>
    %17 = arith.truncf %16 : vector<16x256xf32> to vector<16x256xbf16>
    %c0_12 = arith.constant 0 : index
    %c0_13 = arith.constant 0 : index
    %18 = vector.load %arg6[%c0_12, %c0_13] : memref<256x128xbf16, #tpu.memory_space<vmem>>, vector<256x128xbf16>
    %cst_14 = arith.constant dense<0.000000e+00> : vector<16x128xf32>
    %19 = tpu.matmul %17, %18, %cst_14 {dimension_numbers = #tpu.dot_dimension_numbers<[1], [0], [0], [1], [0, 0, 1, 1], [], []>} : vector<16x256xbf16>, vector<256x128xbf16>, vector<16x128xf32> -> vector<16x128xf32>
    %c0_15 = arith.constant 0 : index
    %c0_16 = arith.constant 0 : index
    %20 = vector.load %arg7[%c0_15, %c0_16] : memref<1x128xf32, #tpu.memory_space<vmem>>, vector<1x128xf32>
    %21 = vector.broadcast %20 : vector<1x128xf32> to vector<16x128xf32>
    %22 = arith.addf %19, %21 : vector<16x128xf32>
    %c0_17 = arith.constant 0 : index
    %c0_18 = arith.constant 0 : index
    %23 = vector.load %arg8[%c0_17, %c0_18] : memref<16x128xf32, #tpu.memory_space<vmem>>, vector<16x128xf32>
    tpu.vector_store %arg8[%c0_17, %c0_18], %22 {strides = array<i32>} : memref<16x128xf32, #tpu.memory_space<vmem>>, vector<16x128xf32>,
    return
  }
  func.func @transform_0(%arg0: i32) -> (i32, i32) {
    %c0_i32 = arith.constant 0 : i32
    %c0_i32_0 = arith.constant 0 : i32
    return %arg0, %c0_i32 : i32, i32
  }
  func.func @transform_1(%arg0: i32) -> (i32, i32) {
    %c0_i32 = arith.constant 0 : i32
    %c0_i32_0 = arith.constant 0 : i32
    %c0_i32_1 = arith.constant 0 : i32
    return %c0_i32, %c0_i32_0 : i32, i32
  }
  func.func @transform_2(%arg0: i32) -> (i32, i32) {
    %c0_i32 = arith.constant 0 : i32
    %c0_i32_0 = arith.constant 0 : i32
    %c0_i32_1 = arith.constant 0 : i32
    return %c0_i32, %c0_i32_0 : i32, i32
  }
  func.func @transform_3(%arg0: i32) -> (i32, i32) {
    %c0_i32 = arith.constant 0 : i32
    %c0_i32_0 = arith.constant 0 : i32
    %c0_i32_1 = arith.constant 0 : i32
    return %c0_i32, %c0_i32_0 : i32, i32
  }
  func.func @transform_4(%arg0: i32) -> (i32, i32) {
    %c0_i32 = arith.constant 0 : i32
    %c0_i32_0 = arith.constant 0 : i32
    %c0_i32_1 = arith.constant 0 : i32
    return %c0_i32, %c0_i32_0 : i32, i32
  }
  func.func @transform_5(%arg0: i32) -> (i32, i32) {
    %c0_i32 = arith.constant 0 : i32
    %c0_i32_0 = arith.constant 0 : i32
    %c0_i32_1 = arith.constant 0 : i32
    return %c0_i32, %c0_i32_0 : i32, i32
  }
  func.func @transform_6(%arg0: i32) -> (i32, i32) {
    %c0_i32 = arith.constant 0 : i32
    %c0_i32_0 = arith.constant 0 : i32
    %c0_i32_1 = arith.constant 0 : i32
    return %c0_i32, %c0_i32_0 : i32, i32
  }
  func.func @transform_7(%arg0: i32) -> (i32, i32) {
    %c0_i32 = arith.constant 0 : i32
    %c0_i32_0 = arith.constant 0 : i32
    return %arg0, %c0_i32 : i32, i32
  }
}

</mosaic_0001>

<llo_original>
// kernel: _forward_impl.1
$region0: #{_forward_impl.1}
  #allocation0 [shape = 'u32[]', space=smem, size = 0x4, offset = 0x4, fixed_abs, tag = 'smem constant byte address 0x4 - core index']
  #allocation1 [shape = 'u32[144,128]{1,0:T(1,128)}', space=vmem, size = 0x12000, scoped, tag = 'internal scratch']
  %s0 = inlined_call_operand.hbm [shape: f32[16,128], index: 0, kind: input, shape index: {}]
  %s1 = inlined_call_operand.hbm [shape: bf16[128,512], index: 1, kind: input, shape index: {}]
  %s2 = inlined_call_operand.vmem [shape: f32[1,512], index: 2, kind: input, shape index: {}]
  %s3 = inlined_call_operand.hbm [shape: bf16[512,256], index: 3, kind: input, shape index: {}]
  %s4 = inlined_call_operand.vmem [shape: f32[1,256], index: 4, kind: input, shape index: {}]
  %s5 = inlined_call_operand.hbm [shape: bf16[256,128], index: 5, kind: input, shape index: {}]
  %s6 = inlined_call_operand.vmem [shape: f32[1,128], index: 6, kind: input, shape index: {}]
  %s7 = inlined_call_operand.hbm [shape: f32[16,128], index: 7, kind: output, shape index: {}]
  %s8 = sld [smem:[#allocation0]]
  $region54: #{_forward_impl.1} parent=0
    _
  %s10 = ssub.s32 1, %s8
  %s11 = scalar_select 0, %s10, %s8
  $region1: #{_forward_impl.1} parent=0
    #allocation2 [shape = 'u8[8192]{0}', space=vmem, size = 0x2000, scoped, tag = 'input window, operand 0, single buffered']
    #allocation3 [shape = 's32[1]{0}', space=sflag, size = 0x4, scoped, tag = 'scoped memory for _forward_impl.1']
    #allocation4 [shape = 's32[1]{0}', space=sflag, size = 0x4, scoped, tag = 'scoped memory for _forward_impl.1']
    #allocation5 [shape = 'u8[131072]{0}', space=vmem, size = 0x20000, scoped, tag = 'input window, operand 1, single buffered']
    #allocation6 [shape = 's32[1]{0}', space=sflag, size = 0x4, scoped, tag = 'scoped memory for _forward_impl.1']
    #allocation7 [shape = 'u8[262144]{0}', space=vmem, size = 0x40000, scoped, tag = 'input window, operand 3, single buffered']
    #allocation8 [shape = 'u8[65536]{0}', space=vmem, size = 0x10000, scoped, tag = 'input window, operand 5, single buffered']
    #allocation9 [shape = 's32[1]{0}', space=sflag, size = 0x4, scoped, tag = 'scoped memory for _forward_impl.1']
    #allocation10 [shape = 'u8[8192]{0}', space=vmem, size = 0x2000, scoped, tag = 'output window, operand 0, single buffered']
    %12 = vsyncpa [#allocation3], 0
    %13 = vsyncpa [#allocation6], 0
    %14 = vsyncpa [#allocation9], 0
    %15 = vsyncpa [#allocation4], 0
    // Predicated region
    $region2: #{_forward_impl.1} parent=1 // pred_check
      _
    $region3: #{_forward_impl.1} parent=1 // pred_check_branch
      %17 = sbr.rel (0) target = $region5
    $region4: #{_forward_impl.1} parent=1 // pred_region
      %s19 = ssub.s32 256, 256
      %20 = vsyncadd [#allocation3], %s19
      %s21 = sshll.u32 [#allocation2], 4
      %s22 = int_to_ptr.vmem [resolvable:$true] %s21
      %27 = dma.hbm_to_vmem [thread:$0]  %s0, 256, %s22, [#allocation3], 128, 128, 8
    $region5: #{_forward_impl.1} parent=1 // pred_fallthru
      _
    // Predicated region
    $region6: #{_forward_impl.1} parent=1 // pred_check
      _
    $region7: #{_forward_impl.1} parent=1 // pred_check_branch
      %29 = sbr.rel (0) target = $region9
    $region8: #{_forward_impl.1} parent=1 // pred_region
      %s31 = ssub.s32 4096, 4096
      %32 = vsyncadd [#allocation6], %s31
      %s33 = sshll.u32 [#allocation5], 4
      %s34 = int_to_ptr.vmem [resolvable:$true] %s33
      %39 = dma.hbm_to_vmem [thread:$0]  %s1, 4096, %s34, [#allocation6], 256, 256, 16
    $region9: #{_forward_impl.1} parent=1 // pred_fallthru
      _
    // Predicated region
    $region10: #{_forward_impl.1} parent=1 // pred_check
      _
    $region11: #{_forward_impl.1} parent=1 // pred_check_branch
      %41 = sbr.rel (0) target = $region13
    $region12: #{_forward_impl.1} parent=1 // pred_region
      _
    $region13: #{_forward_impl.1} parent=1 // pred_fallthru
      _
    // Predicated region
    $region14: #{_forward_impl.1} parent=1 // pred_check
      _
    $region15: #{_forward_impl.1} parent=1 // pred_check_branch
      %43 = sbr.rel (0) target = $region17
    $region16: #{_forward_impl.1} parent=1 // pred_region
      %s45 = ssub.s32 8192, 8192
      %46 = vsyncadd [#allocation6], %s45
      %s47 = sshll.u32 [#allocation7], 4
      %s48 = int_to_ptr.vmem [resolvable:$true] %s47
      %53 = dma.hbm_to_vmem [thread:$0]  %s3, 8192, %s48, [#allocation6], 128, 128, 8
    $region17: #{_forward_impl.1} parent=1 // pred_fallthru
      _
    // Predicated region
    $region18: #{_forward_impl.1} parent=1 // pred_check
      _
    $region19: #{_forward_impl.1} parent=1 // pred_check_branch
      %55 = sbr.rel (0) target = $region21
    $region20: #{_forward_impl.1} parent=1 // pred_region
      _
    $region21: #{_forward_impl.1} parent=1 // pred_fallthru
      _
    // Predicated region
    $region22: #{_forward_impl.1} parent=1 // pred_check
      _
    $region23: #{_forward_impl.1} parent=1 // pred_check_branch
      %57 = sbr.rel (0) target = $region25
    $region24: #{_forward_impl.1} parent=1 // pred_region
      %s59 = ssub.s32 2048, 2048
      %60 = vsyncadd [#allocation9], %s59
      %s61 = sshll.u32 [#allocation8], 4
      %s62 = int_to_ptr.vmem [resolvable:$true] %s61
      %67 = dma.hbm_to_vmem [thread:$0]  %s5, 2048, %s62, [#allocation9], 64, 64, 4
    $region25: #{_forward_impl.1} parent=1 // pred_fallthru
      _
    // Predicated region
    $region26: #{_forward_impl.1} parent=1 // pred_check
      _
    $region27: #{_forward_impl.1} parent=1 // pred_check_branch
      %69 = sbr.rel (0) target = $region29
    $region28: #{_forward_impl.1} parent=1 // pred_region
      _
    $region29: #{_forward_impl.1} parent=1 // pred_fallthru
      _
    // Predicated region
    $region30: #{_forward_impl.1} parent=1 // pred_check
      _
    $region31: #{_forward_impl.1} parent=1 // pred_check_branch
      %71 = sbr.rel (0) target = $region33
    $region32: #{_forward_impl.1} parent=1 // pred_region
      %72 = dma.done [#allocation3], 256
    $region33: #{_forward_impl.1} parent=1 // pred_fallthru
      _
    // Predicated region
    $region34: #{_forward_impl.1} parent=1 // pred_check
      _
    $region35: #{_forward_impl.1} parent=1 // pred_check_branch
      %74 = sbr.rel (0) target = $region37
    $region36: #{_forward_impl.1} parent=1 // pred_region
      %75 = dma.done [#allocation6], 4096
    $region37: #{_forward_impl.1} parent=1 // pred_fallthru
      _
    // Predicated region
    $region38: #{_forward_impl.1} parent=1 // pred_check
      _
    $region39: #{_forward_impl.1} parent=1 // pred_check_branch
      %77 = sbr.rel (0) target = $region41
    $region40: #{_forward_impl.1} parent=1 // pred_region
      %78 = dma.done [#allocation6], 8192
    $region41: #{_forward_impl.1} parent=1 // pred_fallthru
      _
    // Predicated region
    $region42: #{_forward_impl.1} parent=1 // pred_check
      _
    $region43: #{_forward_impl.1} parent=1 // pred_check_branch
      %80 = sbr.rel (0) target = $region45
    $region44: #{_forward_impl.1} parent=1 // pred_region
      %81 = dma.done [#allocation9], 2048
    $region45: #{_forward_impl.1} parent=1 // pred_fallthru
      _
    %v83 = vld [vmem:[#allocation2] sm:$0xff]
    %v84 = vld [vmem:[#allocation2 + $0x8] sm:$0xff]
    %v85 = vpack.c.bf16 %v84, %v83
    %v86 = vld [vmem:[#allocation5] sm:$0xff]
    %v87 = vld [vmem:[#allocation5 + $0x8] sm:$0xff]
    %v88 = vld [vmem:[#allocation5 + $0x10] sm:$0xff]
    %v89 = vld [vmem:[#allocation5 + $0x18] sm:$0xff]
    %v90 = vld [vmem:[#allocation5 + $0x20] sm:$0xff]
    %v91 = vld [vmem:[#allocation5 + $0x28] sm:$0xff]
    %v92 = vld [vmem:[#allocation5 + $0x30] sm:$0xff]
    %v93 = vld [vmem:[#allocation5 + $0x38] sm:$0xff]
    %v94 = vld [vmem:[#allocation5 + $0x40] sm:$0xff]
    %v95 = vld [vmem:[#allocation5 + $0x48] sm:$0xff]
    %v96 = vld [vmem:[#allocation5 + $0x50] sm:$0xff]
    %v97 = vld [vmem:[#allocation5 + $0x58] sm:$0xff]
    %v98 = vld [vmem:[#allocation5 + $0x60] sm:$0xff]
    %v99 = vld [vmem:[#allocation5 + $0x68] sm:$0xff]
    %v100 = vld [vmem:[#allocation5 + $0x70] sm:$0xff]
    %v101 = vld [vmem:[#allocation5 + $0x78] sm:$0xff]
    %v102 = vld [vmem:[#allocation5 + $0x80] sm:$0xff]
    %v103 = vld [vmem:[#allocation5 + $0x88] sm:$0xff]
    %v104 = vld [vmem:[#allocation5 + $0x90] sm:$0xff]
    %v105 = vld [vmem:[#allocation5 + $0x98] sm:$0xff]
    %v106 = vld [vmem:[#allocation5 + $0xa0] sm:$0xff]
    %v107 = vld [vmem:[#allocation5 + $0xa8] sm:$0xff]
    %v108 = vld [vmem:[#allocation5 + $0xb0] sm:$0xff]
    %v109 = vld [vmem:[#allocation5 + $0xb8] sm:$0xff]
    %v110 = vld [vmem:[#allocation5 + $0xc0] sm:$0xff]
    %v111 = vld [vmem:[#allocation5 + $0xc8] sm:$0xff]
    %v112 = vld [vmem:[#allocation5 + $0xd0] sm:$0xff]
    %v113 = vld [vmem:[#allocation5 + $0xd8] sm:$0xff]
    %v114 = vld [vmem:[#allocation5 + $0xe0] sm:$0xff]
    %v115 = vld [vmem:[#allocation5 + $0xe8] sm:$0xff]
    %v116 = vld [vmem:[#allocation5 + $0xf0] sm:$0xff]
    %v117 = vld [vmem:[#allocation5 + $0xf8] sm:$0xff]
    %v118 = vld [vmem:[%s2] sm:$0xf]
    %v120 = vlaneseq
    %v121 = vshrl.u32 %v120, 7
    %v122 = vsub.s32 0, %v121
    %v123 = vrot.slane %v118, %v122
    %v124 = vlaneseq
    %v125 = vshrl.u32 %v124, 7
    %v126 = vsub.s32 1, %v125
    %v127 = vrot.slane %v118, %v126
    %v128 = vlaneseq
    %v129 = vshrl.u32 %v128, 7
    %v130 = vsub.s32 2, %v129
    %v131 = vrot.slane %v118, %v130
    %v132 = vlaneseq
    %v133 = vshrl.u32 %v132, 7
    %v134 = vsub.s32 3, %v133
    %v135 = vrot.slane %v118, %v134
    %v172 = vunpack.c.l.b16 %v86
    %v173 = vunpack.c.h.b16 %v86
    %v174 = vunpack.c.l.b16 %v87
    %v175 = vunpack.c.h.b16 %v87
    %v176 = vunpack.c.l.b16 %v88
    %v177 = vunpack.c.h.b16 %v88
    %v178 = vunpack.c.l.b16 %v89
    %v179 = vunpack.c.h.b16 %v89
    %v180 = vunpack.c.l.b16 %v90
    %v181 = vunpack.c.h.b16 %v90
    %v182 = vunpack.c.l.b16 %v91
    %v183 = vunpack.c.h.b16 %v91
    %v184 = vunpack.c.l.b16 %v92
    %v185 = vunpack.c.h.b16 %v92
    %v186 = vunpack.c.l.b16 %v93
    %v187 = vunpack.c.h.b16 %v93
    %v188 = vunpack.c.l.b16 %v94
    %v189 = vunpack.c.h.b16 %v94
    %v190 = vunpack.c.l.b16 %v95
    %v191 = vunpack.c.h.b16 %v95
    %v192 = vunpack.c.l.b16 %v96
    %v193 = vunpack.c.h.b16 %v96
    %v194 = vunpack.c.l.b16 %v97
    %v195 = vunpack.c.h.b16 %v97
    %v196 = vunpack.c.l.b16 %v98
    %v197 = vunpack.c.h.b16 %v98
    %v198 = vunpack.c.l.b16 %v99
    %v199 = vunpack.c.h.b16 %v99
    %v200 = vunpack.c.l.b16 %v100
    %v201 = vunpack.c.h.b16 %v100
    %v202 = vunpack.c.l.b16 %v101
    %v203 = vunpack.c.h.b16 %v101
    %v204 = vunpack.c.l.b16 %v102
    %v205 = vunpack.c.h.b16 %v102
    %v206 = vunpack.c.l.b16 %v103
    %v207 = vunpack.c.h.b16 %v103
    %v208 = vunpack.c.l.b16 %v104
    %v209 = vunpack.c.h.b16 %v104
    %v210 = vunpack.c.l.b16 %v105
    %v211 = vunpack.c.h.b16 %v105
    %v212 = vunpack.c.l.b16 %v106
    %v213 = vunpack.c.h.b16 %v106
    %v214 = vunpack.c.l.b16 %v107
    %v215 = vunpack.c.h.b16 %v107
    %v216 = vunpack.c.l.b16 %v108
    %v217 = vunpack.c.h.b16 %v108
    %v218 = vunpack.c.l.b16 %v109
    %v219 = vunpack.c.h.b16 %v109
    %v220 = vunpack.c.l.b16 %v110
    %v221 = vunpack.c.h.b16 %v110
    %v222 = vunpack.c.l.b16 %v111
    %v223 = vunpack.c.h.b16 %v111
    %v224 = vunpack.c.l.b16 %v112
    %v225 = vunpack.c.h.b16 %v112
    %v226 = vunpack.c.l.b16 %v113
    %v227 = vunpack.c.h.b16 %v113
    %v228 = vunpack.c.l.b16 %v114
    %v229 = vunpack.c.h.b16 %v114
    %v230 = vunpack.c.l.b16 %v115
    %v231 = vunpack.c.h.b16 %v115
    %v232 = vunpack.c.l.b16 %v116
    %v233 = vunpack.c.h.b16 %v116
    %v234 = vunpack.c.l.b16 %v117
    %v235 = vunpack.c.h.b16 %v117
    %v236 = vpack.c.b16 %v176, %v172
    %v237 = vpack.c.b16 %v177, %v173
    %v238 = vpack.c.b16 %v178, %v174
    %v239 = vpack.c.b16 %v179, %v175
    %v240 = vpack.c.b16 %v184, %v180
    %v241 = vpack.c.b16 %v185, %v181
    %v242 = vpack.c.b16 %v186, %v182
    %v243 = vpack.c.b16 %v187, %v183
    %v244 = vpack.c.b16 %v192, %v188
    %v245 = vpack.c.b16 %v193, %v189
    %v246 = vpack.c.b16 %v194, %v190
    %v247 = vpack.c.b16 %v195, %v191
    %v248 = vpack.c.b16 %v200, %v196
    %v249 = vpack.c.b16 %v201, %v197
    %v250 = vpack.c.b16 %v202, %v198
    %v251 = vpack.c.b16 %v203, %v199
    %v252 = vpack.c.b16 %v208, %v204
    %v253 = vpack.c.b16 %v209, %v205
    %v254 = vpack.c.b16 %v210, %v206
    %v255 = vpack.c.b16 %v211, %v207
    %v256 = vpack.c.b16 %v216, %v212
    %v257 = vpack.c.b16 %v217, %v213
    %v258 = vpack.c.b16 %v218, %v214
    %v259 = vpack.c.b16 %v219, %v215
    %v260 = vpack.c.b16 %v224, %v220
    %v261 = vpack.c.b16 %v225, %v221
    %v262 = vpack.c.b16 %v226, %v222
    %v263 = vpack.c.b16 %v227, %v223
    %v264 = vpack.c.b16 %v232, %v228
    %v265 = vpack.c.b16 %v233, %v229
    %v266 = vpack.c.b16 %v234, %v230
    %v267 = vpack.c.b16 %v235, %v231
    %300 = vmatprep.subr.bf16.mxu0 %v237
    %301 = vmatpush1.bf16.msra.mxu0 %v236
    %302 = vmatprep.subr.bf16.mxu0 %v241
    %303 = vmatpush1.bf16.msra.mxu0 %v240
    %304 = vmatprep.subr.bf16.mxu0 %v245
    %305 = vmatpush1.bf16.msra.mxu0 %v244
    %306 = vmatprep.subr.bf16.mxu0 %v249
    %307 = vmatpush1.bf16.msra.mxu0 %v248
    %308 = vmatprep.subr.bf16.mxu0 %v253
    %309 = vmatpush1.bf16.msra.mxu0 %v252
    %310 = vmatprep.subr.bf16.mxu0 %v257
    %311 = vmatpush1.bf16.msra.mxu0 %v256
    %312 = vmatprep.subr.bf16.mxu0 %v261
    %313 = vmatpush1.bf16.msra.mxu0 %v260
    %314 = vmatprep.subr.bf16.mxu0 %v265
    %315 = vmatpush1.bf16.msra.mxu0 %v264
    %316 = vmatprep.subr.bf16.mxu0 0
    %317 = vmatpush1.bf16.msra.mxu0 0
    %318 = vmatprep.subr.bf16.mxu0 0
    %319 = vmatpush1.bf16.msra.mxu0 0
    %320 = vmatprep.subr.bf16.mxu0 0
    %321 = vmatpush1.bf16.msra.mxu0 0
    %322 = vmatprep.subr.bf16.mxu0 0
    %323 = vmatpush1.bf16.msra.mxu0 0
    %324 = vmatprep.subr.bf16.mxu0 0
    %325 = vmatpush1.bf16.msra.mxu0 0
    %326 = vmatprep.subr.bf16.mxu0 0
    %327 = vmatpush1.bf16.msra.mxu0 0
    %328 = vmatprep.subr.bf16.mxu0 0
    %329 = vmatpush1.bf16.msra.mxu0 0
    %330 = vmatprep.subr.bf16.mxu0 0
    %331 = vmatpush1.bf16.msra.mxu0 0
    %332 = vmatprep.mubr.bf16.mxu0 0
    %333 = vmatmul.mubr.bf16.gmra.mrb[0].mxu0 %v85
    %v334 = vpop.f32.mrb[0].mxu0
    %v335 = vadd.f32 %v123, %v334
    %v336 = vpop.f32.mrb[0].mxu0
    %v337 = vadd.f32 %v127, %v336
    %v338 = vpop.f32.mrb[0].mxu0
    %v339 = vadd.f32 %v123, %v338
    %v340 = vpop.f32.mrb[0].mxu0
    %v341 = vadd.f32 %v127, %v340
    %342 = vdwg.mxu0
    %343 = vmatprep.subr.bf16.mxu0 %v239
    %344 = vmatpush1.bf16.msra.mxu0 %v238
    %345 = vmatprep.subr.bf16.mxu0 %v243
    %346 = vmatpush1.bf16.msra.mxu0 %v242
    %347 = vmatprep.subr.bf16.mxu0 %v247
    %348 = vmatpush1.bf16.msra.mxu0 %v246
    %349 = vmatprep.subr.bf16.mxu0 %v251
    %350 = vmatpush1.bf16.msra.mxu0 %v250
    %351 = vmatprep.subr.bf16.mxu0 %v255
    %352 = vmatpush1.bf16.msra.mxu0 %v254
    %353 = vmatprep.subr.bf16.mxu0 %v259
    %354 = vmatpush1.bf16.msra.mxu0 %v258
    %355 = vmatprep.subr.bf16.mxu0 %v263
    %356 = vmatpush1.bf16.msra.mxu0 %v262
    %357 = vmatprep.subr.bf16.mxu0 %v267
    %358 = vmatpush1.bf16.msra.mxu0 %v266
    %359 = vmatprep.subr.bf16.mxu0 0
    %360 = vmatpush1.bf16.msra.mxu0 0
    %361 = vmatprep.subr.bf16.mxu0 0
    %362 = vmatpush1.bf16.msra.mxu0 0
    %363 = vmatprep.subr.bf16.mxu0 0
    %364 = vmatpush1.bf16.msra.mxu0 0
    %365 = vmatprep.subr.bf16.mxu0 0
    %366 = vmatpush1.bf16.msra.mxu0 0
    %367 = vmatprep.subr.bf16.mxu0 0
    %368 = vmatpush1.bf16.msra.mxu0 0
    %369 = vmatprep.subr.bf16.mxu0 0
    %370 = vmatpush1.bf16.msra.mxu0 0
    %371 = vmatprep.subr.bf16.mxu0 0
    %372 = vmatpush1.bf16.msra.mxu0 0
    %373 = vmatprep.subr.bf16.mxu0 0
    %374 = vmatpush1.bf16.msra.mxu0 0
    %375 = vmatprep.mubr.bf16.mxu0 0
    %376 = vmatmul.mubr.bf16.gmra.mrb[0].mxu0 %v85
    %v377 = vpop.f32.mrb[0].mxu0
    %v378 = vadd.f32 %v131, %v377
    %v379 = vpop.f32.mrb[0].mxu0
    %v380 = vadd.f32 %v135, %v379
    %v381 = vpop.f32.mrb[0].mxu0
    %v382 = vadd.f32 %v131, %v381
    %v383 = vpop.f32.mrb[0].mxu0
    %v384 = vadd.f32 %v135, %v383
    %385 = vdwg.mxu0
    %v386 = vmax.f32 %v335, 0.0
    %v387 = vmax.f32 %v337, 0.0
    %v388 = vmax.f32 %v378, 0.0
    %v389 = vmax.f32 %v380, 0.0
    %v390 = vmax.f32 %v339, 0.0
    %v391 = vmax.f32 %v341, 0.0
    %v392 = vmax.f32 %v382, 0.0
    %v393 = vmax.f32 %v384, 0.0
    %v394 = vpack.c.bf16 %v390, %v386
    %v395 = vpack.c.bf16 %v391, %v387
    %v396 = vpack.c.bf16 %v392, %v388
    %v397 = vpack.c.bf16 %v393, %v389
    %v398 = vld [vmem:[#allocation7] sm:$0xff]
    %v399 = vld [vmem:[#allocation7 + $0x8] sm:$0xff]
    %v400 = vld [vmem:[#allocation7 + $0x10] sm:$0xff]
    %v401 = vld [vmem:[#allocation7 + $0x18] sm:$0xff]
    %v402 = vld [vmem:[#allocation7 + $0x20] sm:$0xff]
    %v403 = vld [vmem:[#allocation7 + $0x28] sm:$0xff]
    %v404 = vld [vmem:[#allocation7 + $0x30] sm:$0xff]
    %v405 = vld [vmem:[#allocation7 + $0x38] sm:$0xff]
    %v406 = vld [vmem:[#allocation7 + $0x40] sm:$0xff]
    %v407 = vld [vmem:[#allocation7 + $0x48] sm:$0xff]
    %v408 = vld [vmem:[#allocation7 + $0x50] sm:$0xff]
    %v409 = vld [vmem:[#allocation7 + $0x58] sm:$0xff]
    %v410 = vld [vmem:[#allocation7 + $0x60] sm:$0xff]
    %v411 = vld [vmem:[#allocation7 + $0x68] sm:$0xff]
    %v412 = vld [vmem:[#allocation7 + $0x70] sm:$0xff]
    %v413 = vld [vmem:[#allocation7 + $0x78] sm:$0xff]
    %v414 = vld [vmem:[#allocation7 + $0x80] sm:$0xff]
    %v415 = vld [vmem:[#allocation7 + $0x88] sm:$0xff]
    %v416 = vld [vmem:[#allocation7 + $0x90] sm:$0xff]
    %v417 = vld [vmem:[#allocation7 + $0x98] sm:$0xff]
    %v418 = vld [vmem:[#allocation7 + $0xa0] sm:$0xff]
    %v419 = vld [vmem:[#allocation7 + $0xa8] sm:$0xff]
    %v420 = vld [vmem:[#allocation7 + $0xb0] sm:$0xff]
    %v421 = vld [vmem:[#allocation7 + $0xb8] sm:$0xff]
    %v422 = vld [vmem:[#allocation7 + $0xc0] sm:$0xff]
    %v423 = vld [vmem:[#allocation7 + $0xc8] sm:$0xff]
    %v424 = vld [vmem:[#allocation7 + $0xd0] sm:$0xff]
    %v425 = vld [vmem:[#allocation7 + $0xd8] sm:$0xff]
    %v426 = vld [vmem:[#allocation7 + $0xe0] sm:$0xff]
    %v427 = vld [vmem:[#allocation7 + $0xe8] sm:$0xff]
    %v428 = vld [vmem:[#allocation7 + $0xf0] sm:$0xff]
    %v429 = vld [vmem:[#allocation7 + $0xf8] sm:$0xff]
    %v430 = vld [vmem:[#allocation7 + $0x100] sm:$0xff]
    %v431 = vld [vmem:[#allocation7 + $0x108] sm:$0xff]
    %v432 = vld [vmem:[#allocation7 + $0x110] sm:$0xff]
    %v433 = vld [vmem:[#allocation7 + $0x118] sm:$0xff]
    %v434 = vld [vmem:[#allocation7 + $0x120] sm:$0xff]
    %v435 = vld [vmem:[#allocation7 + $0x128] sm:$0xff]
    %v436 = vld [vmem:[#allocation7 + $0x130] sm:$0xff]
    %v437 = vld [vmem:[#allocation7 + $0x138] sm:$0xff]
    %v438 = vld [vmem:[#allocation7 + $0x140] sm:$0xff]
    %v439 = vld [vmem:[#allocation7 + $0x148] sm:$0xff]
    %v440 = vld [vmem:[#allocation7 + $0x150] sm:$0xff]
    %v441 = vld [vmem:[#allocation7 + $0x158] sm:$0xff]
    %v442 = vld [vmem:[#allocation7 + $0x160] sm:$0xff]
    %v443 = vld [vmem:[#allocation7 + $0x168] sm:$0xff]
    %v444 = vld [vmem:[#allocation7 + $0x170] sm:$0xff]
    %v445 = vld [vmem:[#allocation7 + $0x178] sm:$0xff]
    %v446 = vld [vmem:[#allocation7 + $0x180] sm:$0xff]
    %v447 = vld [vmem:[#allocation7 + $0x188] sm:$0xff]
    %v448 = vld [vmem:[#allocation7 + $0x190] sm:$0xff]
    %v449 = vld [vmem:[#allocation7 + $0x198] sm:$0xff]
    %v450 = vld [vmem:[#allocation7 + $0x1a0] sm:$0xff]
    %v451 = vld [vmem:[#allocation7 + $0x1a8] sm:$0xff]
    %v452 = vld [vmem:[#allocation7 + $0x1b0] sm:$0xff]
    %v453 = vld [vmem:[#allocation7 + $0x1b8] sm:$0xff]
    %v454 = vld [vmem:[#allocation7 + $0x1c0] sm:$0xff]
    %v455 = vld [vmem:[#allocation7 + $0x1c8] sm:$0xff]
    %v456 = vld [vmem:[#allocation7 + $0x1d0] sm:$0xff]
    %v457 = vld [vmem:[#allocation7 + $0x1d8] sm:$0xff]
    %v458 = vld [vmem:[#allocation7 + $0x1e0] sm:$0xff]
    %v459 = vld [vmem:[#allocation7 + $0x1e8] sm:$0xff]
    %v460 = vld [vmem:[#allocation7 + $0x1f0] sm:$0xff]
    %v461 = vld [vmem:[#allocation7 + $0x1f8] sm:$0xff]
    %v462 = vld [vmem:[%s4] sm:$0x3]
    %v464 = vlaneseq
    %v465 = vshrl.u32 %v464, 7
    %v466 = vsub.s32 0, %v465
    %v467 = vrot.slane %v462, %v466
    %v468 = vlaneseq
    %v469 = vshrl.u32 %v468, 7
    %v470 = vsub.s32 1, %v469
    %v471 = vrot.slane %v462, %v470
    %v538 = vunpack.c.l.b16 %v398
    %v539 = vunpack.c.h.b16 %v398
    %v540 = vunpack.c.l.b16 %v399
    %v541 = vunpack.c.h.b16 %v399
    %v542 = vunpack.c.l.b16 %v400
    %v543 = vunpack.c.h.b16 %v400
    %v544 = vunpack.c.l.b16 %v401
    %v545 = vunpack.c.h.b16 %v401
    %v546 = vunpack.c.l.b16 %v402
    %v547 = vunpack.c.h.b16 %v402
    %v548 = vunpack.c.l.b16 %v403
    %v549 = vunpack.c.h.b16 %v403
    %v550 = vunpack.c.l.b16 %v404
    %v551 = vunpack.c.h.b16 %v404
    %v552 = vunpack.c.l.b16 %v405
    %v553 = vunpack.c.h.b16 %v405
    %v554 = vunpack.c.l.b16 %v406
    %v555 = vunpack.c.h.b16 %v406
    %v556 = vunpack.c.l.b16 %v407
    %v557 = vunpack.c.h.b16 %v407
    %v558 = vunpack.c.l.b16 %v408
    %v559 = vunpack.c.h.b16 %v408
    %v560 = vunpack.c.l.b16 %v409
    %v561 = vunpack.c.h.b16 %v409
    %v562 = vunpack.c.l.b16 %v410
    %v563 = vunpack.c.h.b16 %v410
    %v564 = vunpack.c.l.b16 %v411
    %v565 = vunpack.c.h.b16 %v411
    %v566 = vunpack.c.l.b16 %v412
    %v567 = vunpack.c.h.b16 %v412
    %v568 = vunpack.c.l.b16 %v413
    %v569 = vunpack.c.h.b16 %v413
    %v570 = vunpack.c.l.b16 %v414
    %v571 = vunpack.c.h.b16 %v414
    %v572 = vunpack.c.l.b16 %v415
    %v573 = vunpack.c.h.b16 %v415
    %v574 = vunpack.c.l.b16 %v416
    %v575 = vunpack.c.h.b16 %v416
    %v576 = vunpack.c.l.b16 %v417
    %v577 = vunpack.c.h.b16 %v417
    %v578 = vunpack.c.l.b16 %v418
    %v579 = vunpack.c.h.b16 %v418
    %v580 = vunpack.c.l.b16 %v419
    %v581 = vunpack.c.h.b16 %v419
    %v582 = vunpack.c.l.b16 %v420
    %v583 = vunpack.c.h.b16 %v420
    %v584 = vunpack.c.l.b16 %v421
    %v585 = vunpack.c.h.b16 %v421
    %v586 = vunpack.c.l.b16 %v422
    %v587 = vunpack.c.h.b16 %v422
    %v588 = vunpack.c.l.b16 %v423
    %v589 = vunpack.c.h.b16 %v423
    %v590 = vunpack.c.l.b16 %v424
    %v591 = vunpack.c.h.b16 %v424
    %v592 = vunpack.c.l.b16 %v425
    %v593 = vunpack.c.h.b16 %v425
    %v594 = vunpack.c.l.b16 %v426
    %v595 = vunpack.c.h.b16 %v426
    %v596 = vunpack.c.l.b16 %v427
    %v597 = vunpack.c.h.b16 %v427
    %v598 = vunpack.c.l.b16 %v428
    %v599 = vunpack.c.h.b16 %v428
    %v600 = vunpack.c.l.b16 %v429
    %v601 = vunpack.c.h.b16 %v429
    %v602 = vunpack.c.l.b16 %v430
    %v603 = vunpack.c.h.b16 %v430
    %v604 = vunpack.c.l.b16 %v431
    %v605 = vunpack.c.h.b16 %v431
    %v606 = vunpack.c.l.b16 %v432
    %v607 = vunpack.c.h.b16 %v432
    %v608 = vunpack.c.l.b16 %v433
    %v609 = vunpack.c.h.b16 %v433
    %v610 = vunpack.c.l.b16 %v434
    %v611 = vunpack.c.h.b16 %v434
    %v612 = vunpack.c.l.b16 %v435
    %v613 = vunpack.c.h.b16 %v435
    %v614 = vunpack.c.l.b16 %v436
    %v615 = vunpack.c.h.b16 %v436
    %v616 = vunpack.c.l.b16 %v437
    %v617 = vunpack.c.h.b16 %v437
    %v618 = vunpack.c.l.b16 %v438
    %v619 = vunpack.c.h.b16 %v438
    %v620 = vunpack.c.l.b16 %v439
    %v621 = vunpack.c.h.b16 %v439
    %v622 = vunpack.c.l.b16 %v440
    %v623 = vunpack.c.h.b16 %v440
    %v624 = vunpack.c.l.b16 %v441
    %v625 = vunpack.c.h.b16 %v441
    %v626 = vunpack.c.l.b16 %v442
    %v627 = vunpack.c.h.b16 %v442
    %v628 = vunpack.c.l.b16 %v443
    %v629 = vunpack.c.h.b16 %v443
    %v630 = vunpack.c.l.b16 %v444
    %v631 = vunpack.c.h.b16 %v444
    %v632 = vunpack.c.l.b16 %v445
    %v633 = vunpack.c.h.b16 %v445
    %v634 = vunpack.c.l.b16 %v446
    %v635 = vunpack.c.h.b16 %v446
    %v636 = vunpack.c.l.b16 %v447
    %v637 = vunpack.c.h.b16 %v447
    %v638 = vunpack.c.l.b16 %v448
    %v639 = vunpack.c.h.b16 %v448
    %v640 = vunpack.c.l.b16 %v449
    %v641 = vunpack.c.h.b16 %v449
    %v642 = vunpack.c.l.b16 %v450
    %v643 = vunpack.c.h.b16 %v450
    %v644 = vunpack.c.l.b16 %v451
    %v645 = vunpack.c.h.b16 %v451
    %v646 = vunpack.c.l.b16 %v452
    %v647 = vunpack.c.h.b16 %v452
    %v648 = vunpack.c.l.b16 %v453
    %v649 = vunpack.c.h.b16 %v453
    %v650 = vunpack.c.l.b16 %v454
    %v651 = vunpack.c.h.b16 %v454
    %v652 = vunpack.c.l.b16 %v455
    %v653 = vunpack.c.h.b16 %v455
    %v654 = vunpack.c.l.b16 %v456
    %v655 = vunpack.c.h.b16 %v456
    %v656 = vunpack.c.l.b16 %v457
    %v657 = vunpack.c.h.b16 %v457
    %v658 = vunpack.c.l.b16 %v458
    %v659 = vunpack.c.h.b16 %v458
    %v660 = vunpack.c.l.b16 %v459
    %v661 = vunpack.c.h.b16 %v459
    %v662 = vunpack.c.l.b16 %v460
    %v663 = vunpack.c.h.b16 %v460
    %v664 = vunpack.c.l.b16 %v461
    %v665 = vunpack.c.h.b16 %v461
    %v666 = vpack.c.b16 %v540, %v538
    %v667 = vpack.c.b16 %v541, %v539
    %v668 = vpack.c.b16 %v544, %v542
    %v669 = vpack.c.b16 %v545, %v543
    %v670 = vpack.c.b16 %v548, %v546
    %v671 = vpack.c.b16 %v549, %v547
    %v672 = vpack.c.b16 %v552, %v550
    %v673 = vpack.c.b16 %v553, %v551
    %v674 = vpack.c.b16 %v556, %v554
    %v675 = vpack.c.b16 %v557, %v555
    %v676 = vpack.c.b16 %v560, %v558
    %v677 = vpack.c.b16 %v561, %v559
    %v678 = vpack.c.b16 %v564, %v562
    %v679 = vpack.c.b16 %v565, %v563
    %v680 = vpack.c.b16 %v568, %v566
    %v681 = vpack.c.b16 %v569, %v567
    %v682 = vpack.c.b16 %v572, %v570
    %v683 = vpack.c.b16 %v573, %v571
    %v684 = vpack.c.b16 %v576, %v574
    %v685 = vpack.c.b16 %v577, %v575
    %v686 = vpack.c.b16 %v580, %v578
    %v687 = vpack.c.b16 %v581, %v579
    %v688 = vpack.c.b16 %v584, %v582
    %v689 = vpack.c.b16 %v585, %v583
    %v690 = vpack.c.b16 %v588, %v586
    %v691 = vpack.c.b16 %v589, %v587
    %v692 = vpack.c.b16 %v592, %v590
    %v693 = vpack.c.b16 %v593, %v591
    %v694 = vpack.c.b16 %v596, %v594
    %v695 = vpack.c.b16 %v597, %v595
    %v696 = vpack.c.b16 %v600, %v598
    %v697 = vpack.c.b16 %v601, %v599
    %v698 = vpack.c.b16 %v604, %v602
    %v699 = vpack.c.b16 %v605, %v603
    %v700 = vpack.c.b16 %v608, %v606
    %v701 = vpack.c.b16 %v609, %v607
    %v702 = vpack.c.b16 %v612, %v610
    %v703 = vpack.c.b16 %v613, %v611
    %v704 = vpack.c.b16 %v616, %v614
    %v705 = vpack.c.b16 %v617, %v615
    %v706 = vpack.c.b16 %v620, %v618
    %v707 = vpack.c.b16 %v621, %v619
    %v708 = vpack.c.b16 %v624, %v622
    %v709 = vpack.c.b16 %v625, %v623
    %v710 = vpack.c.b16 %v628, %v626
    %v711 = vpack.c.b16 %v629, %v627
    %v712 = vpack.c.b16 %v632, %v630
    %v713 = vpack.c.b16 %v633, %v631
    %v714 = vpack.c.b16 %v636, %v634
    %v715 = vpack.c.b16 %v637, %v635
    %v716 = vpack.c.b16 %v640, %v638
    %v717 = vpack.c.b16 %v641, %v639
    %v718 = vpack.c.b16 %v644, %v642
    %v719 = vpack.c.b16 %v645, %v643
    %v720 = vpack.c.b16 %v648, %v646
    %v721 = vpack.c.b16 %v649, %v647
    %v722 = vpack.c.b16 %v652, %v650
    %v723 = vpack.c.b16 %v653, %v651
    %v724 = vpack.c.b16 %v656, %v654
    %v725 = vpack.c.b16 %v657, %v655
    %v726 = vpack.c.b16 %v660, %v658
    %v727 = vpack.c.b16 %v661, %v659
    %v728 = vpack.c.b16 %v664, %v662
    %v729 = vpack.c.b16 %v665, %v663
    %794 = vmatprep.subr.bf16.mxu0 %v667
    %795 = vmatpush1.bf16.msra.mxu0 %v666
    %796 = vmatprep.subr.bf16.mxu0 %v669
    %797 = vmatpush1.bf16.msra.mxu0 %v668
    %798 = vmatprep.subr.bf16.mxu0 %v671
    %799 = vmatpush1.bf16.msra.mxu0 %v670
    %800 = vmatprep.subr.bf16.mxu0 %v673
    %801 = vmatpush1.bf16.msra.mxu0 %v672
    %802 = vmatprep.subr.bf16.mxu0 %v675
    %803 = vmatpush1.bf16.msra.mxu0 %v674
    %804 = vmatprep.subr.bf16.mxu0 %v677
    %805 = vmatpush1.bf16.msra.mxu0 %v676
    %806 = vmatprep.subr.bf16.mxu0 %v679
    %807 = vmatpush1.bf16.msra.mxu0 %v678
    %808 = vmatprep.subr.bf16.mxu0 %v681
    %809 = vmatpush1.bf16.msra.mxu0 %v680
    %810 = vmatprep.subr.bf16.mxu0 %v683
    %811 = vmatpush1.bf16.msra.mxu0 %v682
    %812 = vmatprep.subr.bf16.mxu0 %v685
    %813 = vmatpush1.bf16.msra.mxu0 %v684
    %814 = vmatprep.subr.bf16.mxu0 %v687
    %815 = vmatpush1.bf16.msra.mxu0 %v686
    %816 = vmatprep.subr.bf16.mxu0 %v689
    %817 = vmatpush1.bf16.msra.mxu0 %v688
    %818 = vmatprep.subr.bf16.mxu0 %v691
    %819 = vmatpush1.bf16.msra.mxu0 %v690
    %820 = vmatprep.subr.bf16.mxu0 %v693
    %821 = vmatpush1.bf16.msra.mxu0 %v692
    %822 = vmatprep.subr.bf16.mxu0 %v695
    %823 = vmatpush1.bf16.msra.mxu0 %v694
    %824 = vmatprep.subr.bf16.mxu0 %v697
    %825 = vmatpush1.bf16.msra.mxu0 %v696
    %826 = vmatprep.mubr.bf16.mxu0 %v395
    %827 = vmatmul.mubr.bf16.gmra.mrb[0].mxu0 %v394
    %v828 = vpop.f32.mrb[0].mxu0
    %v829 = vadd.f32 %v467, %v828
    %v830 = vpop.f32.mrb[0].mxu0
    %v831 = vadd.f32 %v471, %v830
    %v832 = vpop.f32.mrb[0].mxu0
    %v833 = vadd.f32 %v467, %v832
    %v834 = vpop.f32.mrb[0].mxu0
    %v835 = vadd.f32 %v471, %v834
    %836 = vdwg.mxu0
    %837 = vmatprep.subr.bf16.mxu0 %v699
    %838 = vmatpush1.bf16.msra.mxu0 %v698
    %839 = vmatprep.subr.bf16.mxu0 %v701
    %840 = vmatpush1.bf16.msra.mxu0 %v700
    %841 = vmatprep.subr.bf16.mxu0 %v703
    %842 = vmatpush1.bf16.msra.mxu0 %v702
    %843 = vmatprep.subr.bf16.mxu0 %v705
    %844 = vmatpush1.bf16.msra.mxu0 %v704
    %845 = vmatprep.subr.bf16.mxu0 %v707
    %846 = vmatpush1.bf16.msra.mxu0 %v706
    %847 = vmatprep.subr.bf16.mxu0 %v709
    %848 = vmatpush1.bf16.msra.mxu0 %v708
    %849 = vmatprep.subr.bf16.mxu0 %v711
    %850 = vmatpush1.bf16.msra.mxu0 %v710
    %851 = vmatprep.subr.bf16.mxu0 %v713
    %852 = vmatpush1.bf16.msra.mxu0 %v712
    %853 = vmatprep.subr.bf16.mxu0 %v715
    %854 = vmatpush1.bf16.msra.mxu0 %v714
    %855 = vmatprep.subr.bf16.mxu0 %v717
    %856 = vmatpush1.bf16.msra.mxu0 %v716
    %857 = vmatprep.subr.bf16.mxu0 %v719
    %858 = vmatpush1.bf16.msra.mxu0 %v718
    %859 = vmatprep.subr.bf16.mxu0 %v721
    %860 = vmatpush1.bf16.msra.mxu0 %v720
    %861 = vmatprep.subr.bf16.mxu0 %v723
    %862 = vmatpush1.bf16.msra.mxu0 %v722
    %863 = vmatprep.subr.bf16.mxu0 %v725
    %864 = vmatpush1.bf16.msra.mxu0 %v724
    %865 = vmatprep.subr.bf16.mxu0 %v727
    %866 = vmatpush1.bf16.msra.mxu0 %v726
    %867 = vmatprep.subr.bf16.mxu0 %v729
    %868 = vmatpush1.bf16.msra.mxu0 %v728
    %869 = vmatprep.mubr.bf16.mxu0 %v397
    %870 = vmatmul.mubr.bf16.gmra.mrb[0].mxu0 %v396
    %v871 = vpop.f32.mrb[0].mxu0
    %v872 = vadd.f32 %v829, %v871
    %v873 = vpop.f32.mrb[0].mxu0
    %v874 = vadd.f32 %v831, %v873
    %v875 = vpop.f32.mrb[0].mxu0
    %v876 = vadd.f32 %v833, %v875
    %v877 = vpop.f32.mrb[0].mxu0
    %v878 = vadd.f32 %v835, %v877
    %879 = vdwg.mxu0
    %v880 = vmax.f32 %v872, 0.0
    %v881 = vmax.f32 %v874, 0.0
    %v882 = vmax.f32 %v876, 0.0
    %v883 = vmax.f32 %v878, 0.0
    %v884 = vpack.c.bf16 %v882, %v880
    %v885 = vpack.c.bf16 %v883, %v881
    %v886 = vld [vmem:[#allocation8] sm:$0xf]
    %v887 = vld [vmem:[#allocation8 + $0x4] sm:$0xf]
    %v888 = vld [vmem:[#allocation8 + $0x8] sm:$0xf]
    %v889 = vld [vmem:[#allocation8 + $0xc] sm:$0xf]
    %v890 = vld [vmem:[#allocation8 + $0x10] sm:$0xf]
    %v891 = vld [vmem:[#allocation8 + $0x14] sm:$0xf]
    %v892 = vld [vmem:[#allocation8 + $0x18] sm:$0xf]
    %v893 = vld [vmem:[#allocation8 + $0x1c] sm:$0xf]
    %v894 = vld [vmem:[#allocation8 + $0x20] sm:$0xf]
    %v895 = vld [vmem:[#allocation8 + $0x24] sm:$0xf]
    %v896 = vld [vmem:[#allocation8 + $0x28] sm:$0xf]
    %v897 = vld [vmem:[#allocation8 + $0x2c] sm:$0xf]
    %v898 = vld [vmem:[#allocation8 + $0x30] sm:$0xf]
    %v899 = vld [vmem:[#allocation8 + $0x34] sm:$0xf]
    %v900 = vld [vmem:[#allocation8 + $0x38] sm:$0xf]
    %v901 = vld [vmem:[#allocation8 + $0x3c] sm:$0xf]
    %v902 = vld [vmem:[#allocation8 + $0x40] sm:$0xf]
    %v903 = vld [vmem:[#allocation8 + $0x44] sm:$0xf]
    %v904 = vld [vmem:[#allocation8 + $0x48] sm:$0xf]
    %v905 = vld [vmem:[#allocation8 + $0x4c] sm:$0xf]
    %v906 = vld [vmem:[#allocation8 + $0x50] sm:$0xf]
    %v907 = vld [vmem:[#allocation8 + $0x54] sm:$0xf]
    %v908 = vld [vmem:[#allocation8 + $0x58] sm:$0xf]
    %v909 = vld [vmem:[#allocation8 + $0x5c] sm:$0xf]
    %v910 = vld [vmem:[#allocation8 + $0x60] sm:$0xf]
    %v911 = vld [vmem:[#allocation8 + $0x64] sm:$0xf]
    %v912 = vld [vmem:[#allocation8 + $0x68] sm:$0xf]
    %v913 = vld [vmem:[#allocation8 + $0x6c] sm:$0xf]
    %v914 = vld [vmem:[#allocation8 + $0x70] sm:$0xf]
    %v915 = vld [vmem:[#allocation8 + $0x74] sm:$0xf]
    %v916 = vld [vmem:[#allocation8 + $0x78] sm:$0xf]
    %v917 = vld [vmem:[#allocation8 + $0x7c] sm:$0xf]
    %v918 = vld [vmem:[%s6] sm:$0x1]
    %v920 = vlaneseq
    %v921 = vshrl.u32 %v920, 7
    %v922 = vsub.s32 0, %v921
    %v923 = vrot.slane %v918, %v922
    %v957 = vunpack.c.l.b16 %v886
    %v958 = vunpack.c.l.b16 %v887
    %v959 = vunpack.c.l.b16 %v888
    %v960 = vunpack.c.l.b16 %v889
    %v961 = vunpack.c.l.b16 %v890
    %v962 = vunpack.c.l.b16 %v891
    %v963 = vunpack.c.l.b16 %v892
    %v964 = vunpack.c.l.b16 %v893
    %v965 = vunpack.c.l.b16 %v894
    %v966 = vunpack.c.l.b16 %v895
    %v967 = vunpack.c.l.b16 %v896
    %v968 = vunpack.c.l.b16 %v897
    %v969 = vunpack.c.l.b16 %v898
    %v970 = vunpack.c.l.b16 %v899
    %v971 = vunpack.c.l.b16 %v900
    %v972 = vunpack.c.l.b16 %v901
    %v973 = vunpack.c.l.b16 %v902
    %v974 = vunpack.c.l.b16 %v903
    %v975 = vunpack.c.l.b16 %v904
    %v976 = vunpack.c.l.b16 %v905
    %v977 = vunpack.c.l.b16 %v906
    %v978 = vunpack.c.l.b16 %v907
    %v979 = vunpack.c.l.b16 %v908
    %v980 = vunpack.c.l.b16 %v909
    %v981 = vunpack.c.l.b16 %v910
    %v982 = vunpack.c.l.b16 %v911
    %v983 = vunpack.c.l.b16 %v912
    %v984 = vunpack.c.l.b16 %v913
    %v985 = vunpack.c.l.b16 %v914
    %v986 = vunpack.c.l.b16 %v915
    %v987 = vunpack.c.l.b16 %v916
    %v988 = vunpack.c.l.b16 %v917
    %v989 = vpack.c.b16 %v958, %v957
    %v990 = vpack.c.b16 %v960, %v959
    %v991 = vpack.c.b16 %v962, %v961
    %v992 = vpack.c.b16 %v964, %v963
    %v993 = vpack.c.b16 %v966, %v965
    %v994 = vpack.c.b16 %v968, %v967
    %v995 = vpack.c.b16 %v970, %v969
    %v996 = vpack.c.b16 %v972, %v971
    %v997 = vpack.c.b16 %v974, %v973
    %v998 = vpack.c.b16 %v976, %v975
    %v999 = vpack.c.b16 %v978, %v977
    %v1000 = vpack.c.b16 %v980, %v979
    %v1001 = vpack.c.b16 %v982, %v981
    %v1002 = vpack.c.b16 %v984, %v983
    %v1003 = vpack.c.b16 %v986, %v985
    %v1004 = vpack.c.b16 %v988, %v987
    %1021 = vmatprep.subr.bf16.mxu0 0
    %1022 = vmatpush1.bf16.msra.mxu0 %v989
    %1023 = vmatprep.subr.bf16.mxu0 0
    %1024 = vmatpush1.bf16.msra.mxu0 %v990
    %1025 = vmatprep.subr.bf16.mxu0 0
    %1026 = vmatpush1.bf16.msra.mxu0 %v991
    %1027 = vmatprep.subr.bf16.mxu0 0
    %1028 = vmatpush1.bf16.msra.mxu0 %v992
    %1029 = vmatprep.subr.bf16.mxu0 0
    %1030 = vmatpush1.bf16.msra.mxu0 %v993
    %1031 = vmatprep.subr.bf16.mxu0 0
    %1032 = vmatpush1.bf16.msra.mxu0 %v994
    %1033 = vmatprep.subr.bf16.mxu0 0
    %1034 = vmatpush1.bf16.msra.mxu0 %v995
    %1035 = vmatprep.subr.bf16.mxu0 0
    %1036 = vmatpush1.bf16.msra.mxu0 %v996
    %1037 = vmatprep.subr.bf16.mxu0 0
    %1038 = vmatpush1.bf16.msra.mxu0 %v997
    %1039 = vmatprep.subr.bf16.mxu0 0
    %1040 = vmatpush1.bf16.msra.mxu0 %v998
    %1041 = vmatprep.subr.bf16.mxu0 0
    %1042 = vmatpush1.bf16.msra.mxu0 %v999
    %1043 = vmatprep.subr.bf16.mxu0 0
    %1044 = vmatpush1.bf16.msra.mxu0 %v1000
    %1045 = vmatprep.subr.bf16.mxu0 0
    %1046 = vmatpush1.bf16.msra.mxu0 %v1001
    %1047 = vmatprep.subr.bf16.mxu0 0
    %1048 = vmatpush1.bf16.msra.mxu0 %v1002
    %1049 = vmatprep.subr.bf16.mxu0 0
    %1050 = vmatpush1.bf16.msra.mxu0 %v1003
    %1051 = vmatprep.subr.bf16.mxu0 0
    %1052 = vmatpush1.bf16.msra.mxu0 %v1004
    %1053 = vmatprep.mubr.bf16.mxu0 %v885
    %1054 = vmatmul.mubr.bf16.gmra.mrb[0].mxu0 %v884
    %v1055 = vpop.f32.mrb[0].mxu0
    %v1056 = vadd.f32 %v923, %v1055
    %v1057 = vpop.f32.mrb[0].mxu0
    %v1058 = vpop.f32.mrb[0].mxu0
    %v1059 = vadd.f32 %v923, %v1058
    %v1060 = vpop.f32.mrb[0].mxu0
    %1061 = vdwg.mxu0
    %1062 = vst [vmem:[#allocation10] sm:$0xff] %v1056
    %1063 = vst [vmem:[#allocation10 + $0x8] sm:$0xff] %v1059
    // Predicated region
    $region46: #{_forward_impl.1} parent=1 // pred_check
      _
    $region47: #{_forward_impl.1} parent=1 // pred_check_branch
      %1065 = sbr.rel (0) target = $region49
    $region48: #{_forward_impl.1} parent=1 // pred_region
      %s1067 = ssub.s32 256, 256
      %1068 = vsyncadd [#allocation4], %s1067
      %s1069 = sshll.u32 [#allocation10], 4
      %s1070 = int_to_ptr.vmem [resolvable:$true] %s1069
      %1075 = dma.vmem_to_hbm [thread:$0]  %s1070, 256, %s7, [#allocation4], 128, 128, 8
    $region49: #{_forward_impl.1} parent=1 // pred_fallthru
      _
    // Predicated region
    $region50: #{_forward_impl.1} parent=1 // pred_check
      _
    $region51: #{_forward_impl.1} parent=1 // pred_check_branch
      %1077 = sbr.rel (0) target = $region53
    $region52: #{_forward_impl.1} parent=1 // pred_region
      %1078 = dma.done [#allocation4], 256
    $region53: #{_forward_impl.1} parent=1 // pred_fallthru
      _
    %1079 = vsyncpa [#allocation3], 1
    %1080 = vsyncpa [#allocation6], 1
    %1081 = vsyncpa [#allocation9], 1
    %1082 = vsyncpa [#allocation4], 1

</llo_original>
